<compile_context>
chip_gen: v6e
topology: v6e:2x2x1
jax: 0.10.0
libtpu: 0.0.40
codegen_flags: <defaults>
</compile_context>

<pallas_src>
import functools

import jax
import jax.numpy as jnp
from jax.experimental import pallas as pl
from jax.experimental.pallas import tpu as pltpu


def _round_up(x, m):
    return (x + m - 1) // m * m


def _pad2(a, rows, cols):
    r, c = a.shape
    return jnp.pad(a, ((0, rows - r), (0, cols - c)))


# ---------------------------------------------------------------------------
# One-time capability probes (tiny compile, cached) and hardware query.
# ---------------------------------------------------------------------------

@functools.lru_cache(maxsize=None)
def _vmem_capacity_bytes() -> int:
    try:
        return int(pltpu.get_tpu_info().vmem_capacity_bytes)
    except Exception:
        return 64 * 1024 * 1024  # conservative (v7x per-TC VMEM)


def _probe_compiles(make):
    try:
        f, arg = make()
        jax.jit(f).lower(arg).compile()
        return True
    except Exception:
        return False


def _copy_kernel(x_ref, o_ref):
    o_ref[...] = x_ref[...]


@functools.lru_cache(maxsize=None)
def _buffered1_supported() -> bool:
    def make():
        f = pl.pallas_call(
            _copy_kernel,
            out_shape=jax.ShapeDtypeStruct((8, 128), jnp.float32),
            grid=(1,),
            in_specs=[pl.BlockSpec((8, 128), lambda i: (0, 0),
                                   pipeline_mode=pl.Buffered(1))],
            out_specs=pl.BlockSpec((8, 128), lambda i: (0, 0)),
        )
        return f, jax.ShapeDtypeStruct((8, 128), jnp.float32)
    return _probe_compiles(make)


@functools.lru_cache(maxsize=None)
def _input_fusion_supported() -> bool:
    def make():
        f = pl.pallas_call(
            _copy_kernel,
            out_shape=jax.ShapeDtypeStruct((8, 128), jnp.float32),
            grid=(1,),
            in_specs=[pl.BlockSpec((8, 128), lambda i: (0, 0))],
            out_specs=pl.BlockSpec((8, 128), lambda i: (0, 0)),
            compiler_params=pltpu.CompilerParams(allow_input_fusion=[True]),
        )
        return f, jax.ShapeDtypeStruct((8, 128), jnp.float32)
    return _probe_compiles(make)


# ---------------------------------------------------------------------------
# Kernel body.
# ---------------------------------------------------------------------------

def _sparse_residual_kernel(f_hid_p, x_ref, wcat_ref, w2_ref, bcat_ref, o_ref):
    x = x_ref[...]                                               # bf16 [tb, F_in_p]
    # Fused first matmul: x @ [W1 | W_skip]  (MXU, bf16 operands, f32 accum),
    # single broadcast bias add of [b1 | b2 + b_skip].
    y = jnp.dot(x, wcat_ref[...],
                preferred_element_type=jnp.float32) + bcat_ref[...]
    h = jnp.maximum(y[:, :f_hid_p], 0.0)                         # relu(x@W1 + b1)
    acc = y[:, f_hid_p:]                                         # x@Ws + (bs + b2)
    # Second matmul (residual branch last layer, no activation before the add).
    r = jnp.dot(h.astype(w2_ref.dtype), w2_ref[...],
                preferred_element_type=jnp.float32)
    # Residual add + final ReLU; lane-dense store.
    o_ref[...] = jnp.maximum(r + acc, 0.0).astype(o_ref.dtype)


# ---------------------------------------------------------------------------
# One-time parameter preparation (mask fold, pad, bf16 cast, concat) — NOT in
# the per-forward hot path.
# ---------------------------------------------------------------------------

def prepare_params(w1m, b1, w2m, b2, wsm, bs):
    """w1m: [in, hidden], w2m: [hidden, out], wsm: [in, out] (already masked,
    already transposed to [in, out] layout). Biases shaped (1, F).

    Returns ((wcat_bf16, w2_bf16, bcat_f32), out_features).
    """
    f_in, f_hid = w1m.shape
    f_out = w2m.shape[1]
    f_in_p = _round_up(f_in, 128)
    f_hid_p = _round_up(f_hid, 128)
    f_out_p = _round_up(f_out, 128)

    wcat = jnp.concatenate(
        [_pad2(w1m, f_in_p, f_hid_p), _pad2(wsm, f_in_p, f_out_p)],
        axis=1).astype(jnp.bfloat16)                             # [F_in_p, hid+out]
    w2p = _pad2(w2m, f_hid_p, f_out_p).astype(jnp.bfloat16)      # [F_hid_p, F_out_p]
    bcat = jnp.concatenate(
        [_pad2(b1.reshape(1, -1), 1, f_hid_p),
         _pad2((b2 + bs).reshape(1, -1), 1, f_out_p)],           # pre-summed biases
        axis=1).astype(jnp.float32)                              # [1, hid+out]
    return (wcat, w2p, bcat), f_out


# ---------------------------------------------------------------------------
# Jitted forward.
# ---------------------------------------------------------------------------

@functools.partial(jax.jit, static_argnames=("f_out", "tile_b", "out_dtype"))
def sparse_residual_forward(x, wcat, w2, bcat, *, f_out, tile_b=None,
                            out_dtype=None):
    B, F_in = x.shape
    F_in_p = _round_up(F_in, 128)
    F_hid_p, F_out_p = w2.shape
    N_cat = F_hid_p + F_out_p
    assert wcat.shape == (F_in_p, N_cat) and bcat.shape == (1, N_cat)

    out_dtype = x.dtype if out_dtype is None else out_dtype
    out_itemsize = jnp.dtype(out_dtype).itemsize

    # Batch tiling: guarantee >= 2 grid steps for B <= 512 (pipelining; keeps
    # both v7x TensorCores busy), MXU-aligned, capped at 512.
    if tile_b is None:
        tile_b = max(128, min(512, _round_up(pl.cdiv(B, 4), 128)))
    tile_b = max(128, _round_up(tile_b, 128))

    # VMEM budget: resident weights (+ double-buffered x/out tiles) must fit.
    single_buf = _buffered1_supported()
    wmult = 1 if single_buf else 2                  # double-buffered fallback
    weight_bytes = wmult * (wcat.size * 2 + w2.size * 2 + bcat.size * 4)

    def act_bytes(tb):
        return 2 * (tb * F_in_p * 2 + tb * F_out_p * out_itemsize)

    vmem_cap = _vmem_capacity_bytes()
    budget = int(vmem_cap * 0.75)
    while tile_b > 128 and weight_bytes + act_bytes(tile_b) > budget:
        tile_b -= 128
    # TODO(synk): if weight_bytes alone exceeds `budget` (very wide layers),
    # switch to the K/N-tiled variant instead of VMEM-resident weights.

    B_p = _round_up(B, tile_b)
    grid = (B_p // tile_b,)

    xp = _pad2(x, B_p, F_in_p).astype(jnp.bfloat16)

    flops = 2 * B_p * (F_in_p * N_cat + F_hid_p * F_out_p)
    bytes_accessed = (xp.size * 2 + wcat.size * 2 + w2.size * 2 + bcat.size * 4
                      + B_p * F_out_p * out_itemsize)
    cost = pl.CostEstimate(flops=flops, transcendentals=0,
                           bytes_accessed=bytes_accessed)

    vmem_limit = int(min(vmem_cap,
                         max(weight_bytes + act_bytes(tile_b) + (4 << 20),
                             16 << 20)))

    # Grid-invariant weight/bias blocks: single VMEM buffer when supported.
    wkw = {"pipeline_mode": pl.Buffered(1)} if single_buf else {}

    cp_kwargs = dict(dimension_semantics=("parallel",),
                     vmem_limit_bytes=vmem_limit)
    if _input_fusion_supported():
        # Let XLA fuse x's pad/cast into the kernel's input DMA.
        cp_kwargs["allow_input_fusion"] = [True, False, False, False]

    out_p = pl.pallas_call(
        functools.partial(_sparse_residual_kernel, F_hid_p),
        out_shape=jax.ShapeDtypeStruct((B_p, F_out_p), out_dtype),
        grid_spec=pltpu.PrefetchScalarGridSpec(
            num_scalar_prefetch=0,
            grid=grid,
            in_specs=[
                pl.BlockSpec((tile_b, F_in_p), lambda i: (i, 0)),          # x tile
                pl.BlockSpec((F_in_p, N_cat), lambda i: (0, 0), **wkw),    # [W1|Ws]
                pl.BlockSpec((F_hid_p, F_out_p), lambda i: (0, 0), **wkw), # W2
                pl.BlockSpec((1, N_cat), lambda i: (0, 0), **wkw),         # [b1|b2+bs]
            ],
            out_specs=pl.BlockSpec((tile_b, F_out_p), lambda i: (i, 0)),
        ),
        compiler_params=pltpu.CompilerParams(**cp_kwargs),
        cost_estimate=cost,
    )(xp, wcat, w2, bcat)

    return out_p[:B, :f_out]


# ---------------------------------------------------------------------------
# Deterministic init mimicking StandardSparseLayer (nn.Linear + binary mask).
# ---------------------------------------------------------------------------

def _init_sparse_linear(key, fan_in, fan_out, density):
    """`density` = fraction of connections KEPT (the module calls it `sparsity`
    but uses it as connection density). Masking + transpose done once here."""
    kw, kb, km = jax.random.split(key, 3)
    bound = 1.0 / jnp.sqrt(jnp.array(fan_in, jnp.float32))
    w = jax.random.uniform(kw, (fan_out, fan_in), jnp.float32, -bound, bound)
    b = jax.random.uniform(kb, (fan_out,), jnp.float32, -bound, bound)
    mask = (jax.random.uniform(km, (fan_out, fan_in), jnp.float32) < density
            ).astype(jnp.float32)
    return (w * mask).T, b.reshape(1, fan_out)     # [in, out], (1, out)


def reference_forward(x, w1m, b1, w2m, b2, wsm, bs):
    # Mirror the kernel's numerics: bf16 operands, f32 accumulation/epilogue.
    def bf(a):
        return a.astype(jnp.bfloat16).astype(jnp.float32)
    xb = bf(x)
    h = jnp.maximum(xb @ bf(w1m) + b1, 0.0)
    r = bf(h) @ bf(w2m) + b2
    idn = xb @ bf(wsm) + bs
    return jnp.maximum(r + idn, 0.0)


if __name__ == "__main__":
    # num_layers=2, in != out -> skip projection active. B=256 / tile_b=128
    # exercises a 2-step pipelined grid; F_in=64 / F_out=96 exercise padding.
    B, F_IN, F_HID, F_OUT = 256, 64, 128, 96
    DENSITY = 0.1  # connection density (module's `sparsity` argument)

    root = jax.random.PRNGKey(0)
    kx, k0, k1, ks = jax.random.split(root, 4)

    x = jax.random.normal(kx, (B, F_IN), jnp.float32)
    w1m, b1 = _init_sparse_linear(k0, F_IN, F_HID, DENSITY)        # layer 0
    w2m, b2 = _init_sparse_linear(k1, F_HID, F_OUT, DENSITY)       # layer 1
    wsm, bs = _init_sparse_linear(ks, F_IN, F_OUT, DENSITY * 0.5)  # skip proj

    (wcat, w2p, bcat), f_out = prepare_params(w1m, b1, w2m, b2, wsm, bs)

    out = sparse_residual_forward(x, wcat, w2p, bcat, f_out=f_out, tile_b=128)
    out = jax.block_until_ready(out)

    ref = reference_forward(x, w1m, b1, w2m, b2, wsm, bs)
    assert out.shape == (B, F_OUT)
    # bf16 operands with f32 accumulation -> loosened tolerance.
    assert jnp.allclose(out, ref, atol=2e-2, rtol=2e-2), \
        float(jnp.max(jnp.abs(out - ref)))

    print("KERNEL_OK")
</pallas_src>

<mosaic_0001>
module attributes {stable_mosaic.version = 11 : i64} {
  func.func @_sparse_residual_kernel(%arg0: i32, %arg1: memref<128x128xbf16, #tpu.memory_space<vmem>>, %arg2: memref<128x256xbf16, #tpu.memory_space<vmem>>, %arg3: memref<128x128xbf16, #tpu.memory_space<vmem>>, %arg4: memref<1x256xf32, #tpu.memory_space<vmem>>, %arg5: memref<128x128xf32, #tpu.memory_space<vmem>>) attributes {dimension_semantics = [#tpu.dimension_semantics<parallel>], iteration_bounds = array<i64: 2>, scalar_prefetch = 0 : i64, scratch_operands = 0 : i64, tpu.core_type = #tpu.core_type<tc>, window_params = [{transform_indices = @transform_0, window_bounds = array<i64: 128, 128>}, {pipeline_mode = #tpu.pipeline_mode<synchronous>, transform_indices = @transform_1, window_bounds = array<i64: 128, 256>}, {pipeline_mode = #tpu.pipeline_mode<synchronous>, transform_indices = @transform_2, window_bounds = array<i64: 128, 128>}, {pipeline_mode = #tpu.pipeline_mode<synchronous>, transform_indices = @transform_3, window_bounds = array<i64: 1, 256>}, {transform_indices = @transform_4, window_bounds = array<i64: 128, 128>}]} {
    %c0 = arith.constant 0 : index
    %c0_0 = arith.constant 0 : index
    %0 = vector.load %arg1[%c0, %c0_0] : memref<128x128xbf16, #tpu.memory_space<vmem>>, vector<128x128xbf16>
    %c0_1 = arith.constant 0 : index
    %c0_2 = arith.constant 0 : index
    %1 = vector.load %arg2[%c0_1, %c0_2] : memref<128x256xbf16, #tpu.memory_space<vmem>>, vector<128x256xbf16>
    %cst = arith.constant dense<0.000000e+00> : vector<128x256xf32>
    %2 = tpu.matmul %0, %1, %cst {dimension_numbers = #tpu.dot_dimension_numbers<[1], [0], [0], [1], [0, 0, 1, 1], [], []>} : vector<128x128xbf16>, vector<128x256xbf16>, vector<128x256xf32> -> vector<128x256xf32>
    %c0_3 = arith.constant 0 : index
    %c0_4 = arith.constant 0 : index
    %3 = vector.load %arg4[%c0_3, %c0_4] : memref<1x256xf32, #tpu.memory_space<vmem>>, vector<1x256xf32>
    %4 = vector.broadcast %3 : vector<1x256xf32> to vector<128x256xf32>
    %5 = arith.addf %2, %4 : vector<128x256xf32>
    %6 = vector.extract_strided_slice %5 {offsets = [0, 0], sizes = [128, 128], strides = [1, 1]} : vector<128x256xf32> to vector<128x128xf32>
    %cst_5 = arith.constant 0.000000e+00 : f32
    %7 = vector.broadcast %cst_5 : f32 to vector<128x128xf32>
    %8 = arith.maximumf %6, %7 : vector<128x128xf32>
    %9 = vector.extract_strided_slice %5 {offsets = [0, 128], sizes = [128, 128], strides = [1, 1]} : vector<128x256xf32> to vector<128x128xf32>
    %10 = arith.truncf %8 : vector<128x128xf32> to vector<128x128xbf16>
    %c0_6 = arith.constant 0 : index
    %c0_7 = arith.constant 0 : index
    %11 = vector.load %arg3[%c0_6, %c0_7] : memref<128x128xbf16, #tpu.memory_space<vmem>>, vector<128x128xbf16>
    %cst_8 = arith.constant dense<0.000000e+00> : vector<128x128xf32>
    %12 = tpu.matmul %10, %11, %cst_8 {dimension_numbers = #tpu.dot_dimension_numbers<[1], [0], [0], [1], [0, 0, 1, 1], [], []>} : vector<128x128xbf16>, vector<128x128xbf16>, vector<128x128xf32> -> vector<128x128xf32>
    %13 = arith.addf %12, %9 : vector<128x128xf32>
    %cst_9 = arith.constant 0.000000e+00 : f32
    %14 = vector.broadcast %cst_9 : f32 to vector<128x128xf32>
    %15 = arith.maximumf %13, %14 : vector<128x128xf32>
    %c0_10 = arith.constant 0 : index
    %c0_11 = arith.constant 0 : index
    %16 = vector.load %arg5[%c0_10, %c0_11] : memref<128x128xf32, #tpu.memory_space<vmem>>, vector<128x128xf32>
    tpu.vector_store %arg5[%c0_10, %c0_11], %15 {strides = array<i32>} : memref<128x128xf32, #tpu.memory_space<vmem>>, vector<128x128xf32>,
    return
  }
  func.func @transform_0(%arg0: i32) -> (i32, i32) {
    %c0_i32 = arith.constant 0 : i32
    %c0_i32_0 = arith.constant 0 : i32
    return %arg0, %c0_i32 : i32, i32
  }
  func.func @transform_1(%arg0: i32) -> (i32, i32) {
    %c0_i32 = arith.constant 0 : i32
    %c0_i32_0 = arith.constant 0 : i32
    %c0_i32_1 = arith.constant 0 : i32
    return %c0_i32, %c0_i32_0 : i32, i32
  }
  func.func @transform_2(%arg0: i32) -> (i32, i32) {
    %c0_i32 = arith.constant 0 : i32
    %c0_i32_0 = arith.constant 0 : i32
    %c0_i32_1 = arith.constant 0 : i32
    return %c0_i32, %c0_i32_0 : i32, i32
  }
  func.func @transform_3(%arg0: i32) -> (i32, i32) {
    %c0_i32 = arith.constant 0 : i32
    %c0_i32_0 = arith.constant 0 : i32
    %c0_i32_1 = arith.constant 0 : i32
    return %c0_i32, %c0_i32_0 : i32, i32
  }
  func.func @transform_4(%arg0: i32) -> (i32, i32) {
    %c0_i32 = arith.constant 0 : i32
    %c0_i32_0 = arith.constant 0 : i32
    return %arg0, %c0_i32 : i32, i32
  }
}

</mosaic_0001>

<llo_original>
// kernel: sparse_residual_forward.1
$region0: #{sparse_residual_forward.1}
  #allocation0 [shape = 'u32[]', space=smem, size = 0x4, offset = 0x4, fixed_abs, tag = 'smem constant byte address 0x4 - core index']
  #allocation1 [shape = 'u32[144,128]{1,0:T(1,128)}', space=vmem, size = 0x12000, scoped, tag = 'internal scratch']
  %s0 = inlined_call_operand.vmem [shape: bf16[256,128], index: 0, kind: input, shape index: {}]
  %s1 = inlined_call_operand.vmem [shape: bf16[128,256], index: 1, kind: input, shape index: {}]
  %s2 = inlined_call_operand.vmem [shape: bf16[128,128], index: 2, kind: input, shape index: {}]
  %s3 = inlined_call_operand.vmem [shape: f32[1,256], index: 3, kind: input, shape index: {}]
  %s4 = inlined_call_operand.vmem [shape: f32[256,128], index: 4, kind: output, shape index: {}]
  %s5 = sld [smem:[#allocation0]]
  $region49: #{sparse_residual_forward.1} parent=0
    _
  %s7 = ssub.s32 1, %s5
  %s8 = scalar_select 0, %s7, %s5
  loop: start=0, step=1, limit=4
  $region2: #{sparse_residual_forward.1} parent=0 // loop_pre_header
    _
  $region3: #{sparse_residual_forward.1} parent=0 // loop_header
    %s10 = sphi 0, %s14
    %p11 = scmp.ge.s32.totalorder %s10, 4
    %s20 = sphi 0, %s22
    %s23 = sphi 0, %s20
    %s24 = sphi 0, %s23
    %s40 = sphi 0, %s24
    %s44 = sphi 0, %s44
    %s46 = sphi 0, %s44
    %s47 = sphi 0, %s46
    %s61 = sphi 0, %s47
    %s65 = sphi 0, %s65
    %s67 = sphi 0, %s65
    %s68 = sphi 0, %s67
    %s82 = sphi 0, %s68
    %s86 = sphi 0, %s86
    %s88 = sphi 0, %s86
    %s89 = sphi 0, %s88
    %s103 = sphi 0, %s89
    %s109 = sphi 0, %s111
    %s112 = sphi 0, %s109
    %s113 = sphi 0, %s112
    %s129 = sphi 0, %s113
  $region4: #{sparse_residual_forward.1} parent=0 // loop_header_branch
    %13 = sbr.rel (%p11) target = $region8
  $region5: #{sparse_residual_forward.1} parent=0 // loop_body
    %s15 = ssub.s32 %s10, 1
    %s16 = ssub.s32 %s10, 2
    %s17 = sadd.s32 %s10, 1
    %s18 = ssub.s32 %s10, %s17
    %p19 = scmp.eq.s32.totalorder %s18, 0
    %s21 = sadd.s32 %s20, 1
    %s22 = scalar_select %p19, %s20, %s21
    %p25 = pneg %p19
    %p26 = scmp.eq.s32.totalorder %s10, 1
    %p27 = por %p25, %p26
    %p28 = scmp.ne.s32.totalorder %s20, %s23
    %p29 = scmp.eq.s32.totalorder %s10, 0
    %p30 = por %p28, %p29
    %p31 = scmp.ne.s32.totalorder %s20, %s23
    %p32 = scmp.eq.s32.totalorder %s15, 1
    %p33 = por %p31, %p32
    %p34 = scmp.ne.s32.totalorder %s23, %s24
    %p35 = scmp.eq.s32.totalorder %s15, 0
    %p36 = por %p34, %p35
    %p37 = scmp.ne.s32.totalorder %s23, %s24
    %p38 = scmp.eq.s32.totalorder %s16, 1
    %p39 = por %p37, %p38
    %p41 = scmp.ne.s32.totalorder %s24, %s40
    %p42 = scmp.eq.s32.totalorder %s16, 0
    %p43 = por %p41, %p42
    %s45 = sadd.s32 %s44, 1
    %p48 = scmp.eq.s32.totalorder %s10, 1
    %p49 = scmp.ne.s32.totalorder %s44, %s46
    %p50 = scmp.eq.s32.totalorder %s10, 0
    %p51 = por %p49, %p50
    %p52 = scmp.ne.s32.totalorder %s44, %s46
    %p53 = scmp.eq.s32.totalorder %s15, 1
    %p54 = por %p52, %p53
    %p55 = scmp.ne.s32.totalorder %s46, %s47
    %p56 = scmp.eq.s32.totalorder %s15, 0
    %p57 = por %p55, %p56
    %p58 = scmp.ne.s32.totalorder %s46, %s47
    %p59 = scmp.eq.s32.totalorder %s16, 1
    %p60 = por %p58, %p59
    %p62 = scmp.ne.s32.totalorder %s47, %s61
    %p63 = scmp.eq.s32.totalorder %s16, 0
    %p64 = por %p62, %p63
    %s66 = sadd.s32 %s65, 1
    %p69 = scmp.eq.s32.totalorder %s10, 1
    %p70 = scmp.ne.s32.totalorder %s65, %s67
    %p71 = scmp.eq.s32.totalorder %s10, 0
    %p72 = por %p70, %p71
    %p73 = scmp.ne.s32.totalorder %s65, %s67
    %p74 = scmp.eq.s32.totalorder %s15, 1
    %p75 = por %p73, %p74
    %p76 = scmp.ne.s32.totalorder %s67, %s68
    %p77 = scmp.eq.s32.totalorder %s15, 0
    %p78 = por %p76, %p77
    %p79 = scmp.ne.s32.totalorder %s67, %s68
    %p80 = scmp.eq.s32.totalorder %s16, 1
    %p81 = por %p79, %p80
    %p83 = scmp.ne.s32.totalorder %s68, %s82
    %p84 = scmp.eq.s32.totalorder %s16, 0
    %p85 = por %p83, %p84
    %s87 = sadd.s32 %s86, 1
    %p90 = scmp.eq.s32.totalorder %s10, 1
    %p91 = scmp.ne.s32.totalorder %s86, %s88
    %p92 = scmp.eq.s32.totalorder %s10, 0
    %p93 = por %p91, %p92
    %p94 = scmp.ne.s32.totalorder %s86, %s88
    %p95 = scmp.eq.s32.totalorder %s15, 1
    %p96 = por %p94, %p95
    %p97 = scmp.ne.s32.totalorder %s88, %s89
    %p98 = scmp.eq.s32.totalorder %s15, 0
    %p99 = por %p97, %p98
    %p100 = scmp.ne.s32.totalorder %s88, %s89
    %p101 = scmp.eq.s32.totalorder %s16, 1
    %p102 = por %p100, %p101
    %p104 = scmp.ne.s32.totalorder %s89, %s103
    %p105 = scmp.eq.s32.totalorder %s16, 0
    %p106 = por %p104, %p105
    %s107 = ssub.s32 %s10, %s17
    %p108 = scmp.eq.s32.totalorder %s107, 0
    %s110 = sadd.s32 %s109, 1
    %s111 = scalar_select %p108, %s109, %s110
    %p114 = pneg %p108
    %p115 = scmp.eq.s32.totalorder %s10, 1
    %p116 = por %p114, %p115
    %p117 = scmp.ne.s32.totalorder %s109, %s112
    %p118 = scmp.eq.s32.totalorder %s10, 0
    %p119 = por %p117, %p118
    %p120 = scmp.ne.s32.totalorder %s109, %s112
    %p121 = scmp.eq.s32.totalorder %s15, 1
    %p122 = por %p120, %p121
    %p123 = scmp.ne.s32.totalorder %s112, %s113
    %p124 = scmp.eq.s32.totalorder %s15, 0
    %p125 = por %p123, %p124
    %p126 = scmp.ne.s32.totalorder %s112, %s113
    %p127 = scmp.eq.s32.totalorder %s16, 1
    %p128 = por %p126, %p127
    %p130 = scmp.ne.s32.totalorder %s113, %s129
    %p131 = scmp.eq.s32.totalorder %s16, 0
    %p132 = por %p130, %p131
    %p133 = scmp.le.s32.totalorder 1, %s10
    %p134 = scmp.lt.s32.totalorder %s10, 3
    %p135 = pnand %p133, %p134
    %p136 = pneg %p135
    // Predicated region
    $region9: #{sparse_residual_forward.1} parent=5 // pred_check
      _
    $region10: #{sparse_residual_forward.1} parent=5 // pred_check_branch
      %138 = sbr.rel (%p135) target = $region12
    $region11: #{sparse_residual_forward.1} parent=5 // pred_region
      %s139 = ssub.s32 %s10, 1
      // Predicated region
      $region13: #{sparse_residual_forward.1} parent=11 // pred_check
        %p140 = pneg %p57
      $region14: #{sparse_residual_forward.1} parent=11 // pred_check_branch
        %142 = sbr.rel (%p140) target = $region16
      $region15: #{sparse_residual_forward.1} parent=11 // pred_region
        _
      $region16: #{sparse_residual_forward.1} parent=11 // pred_fallthru
        _
      // Predicated region
      $region17: #{sparse_residual_forward.1} parent=11 // pred_check
        %p143 = pneg %p78
      $region18: #{sparse_residual_forward.1} parent=11 // pred_check_branch
        %145 = sbr.rel (%p143) target = $region20
      $region19: #{sparse_residual_forward.1} parent=11 // pred_region
        _
      $region20: #{sparse_residual_forward.1} parent=11 // pred_fallthru
        _
      // Predicated region
      $region21: #{sparse_residual_forward.1} parent=11 // pred_check
        %p146 = pneg %p99
      $region22: #{sparse_residual_forward.1} parent=11 // pred_check_branch
        %148 = sbr.rel (%p146) target = $region24
      $region23: #{sparse_residual_forward.1} parent=11 // pred_region
        _
      $region24: #{sparse_residual_forward.1} parent=11 // pred_fallthru
        _
    $region12: #{sparse_residual_forward.1} parent=5 // pred_fallthru
      _
    %p149 = scmp.lt.s32.totalorder %s10, 2
    // Predicated region
    $region25: #{sparse_residual_forward.1} parent=5 // pred_check
      %p150 = pneg %p149
    $region26: #{sparse_residual_forward.1} parent=5 // pred_check_branch
      %152 = sbr.rel (%p150) target = $region28
    $region27: #{sparse_residual_forward.1} parent=5 // pred_region
      // Predicated region
      $region29: #{sparse_residual_forward.1} parent=27 // pred_check
        %p153 = pneg %p30
      $region30: #{sparse_residual_forward.1} parent=27 // pred_check_branch
        %155 = sbr.rel (%p153) target = $region32
      $region31: #{sparse_residual_forward.1} parent=27 // pred_region
        %s156 = smul.u32 16, %s10
        %p157 = scmp.lt.s32.totalorder %s156, 31
        %s158 = scalar_select %p157, %s156, 31
        %s159 = smul.addr %s158, 4
        %s160 = scalar_lea.vmem %s0, %s159
        %s161 = smul.u32 16, %s10
      $region32: #{sparse_residual_forward.1} parent=27 // pred_fallthru
        _
    $region28: #{sparse_residual_forward.1} parent=5 // pred_fallthru
      _
    %p162 = scmp.le.s32.totalorder 1, %s10
    %p163 = scmp.lt.s32.totalorder %s10, 3
    %p164 = pnand %p162, %p163
    %p165 = pneg %p164
    // Predicated region
    $region33: #{sparse_residual_forward.1} parent=5 // pred_check
      _
    $region34: #{sparse_residual_forward.1} parent=5 // pred_check_branch
      %167 = sbr.rel (%p164) target = $region36
    $region35: #{sparse_residual_forward.1} parent=5 // pred_region
      %s168 = ssub.s32 %s10, 1
      %s169 = smul.u32 16, %s15
      %p170 = scmp.lt.s32.totalorder %s169, 31
      %s171 = scalar_select %p170, %s169, 31
      %s172 = smul.addr %s171, 4
      %s173 = scalar_lea.vmem %s0, %s172
      %p174 = pneg %p36
      %p175 = pneg %p33
      %p176 = pneg %p57
      %p177 = pneg %p54
      %p178 = pneg %p78
      %p179 = pneg %p75
      %p180 = pneg %p99
      %p181 = pneg %p96
      %p182 = pneg %p125
      %p183 = pneg %p122
      %s184 = smul.u32 16, %s15
      %p185 = scmp.lt.s32.totalorder %s184, 31
      %s186 = scalar_select %p185, %s184, 31
      %s187 = smul.addr %s186, 8
      %s188 = scalar_lea.vmem %s4, %s187
      %s189 = smul.u32 16, %s15
      %p190 = scmp.lt.s32.totalorder %s189, 31
      %s191 = scalar_select %p190, %s189, 31
      %s192 = smul.addr %s191, 4
      %s193 = scalar_lea.vmem %s0, %s192
      %s194 = smul.u32 16, %s15
      %s195 = smul.u32 16, %s15
      %p196 = scmp.lt.s32.totalorder %s195, 31
      %s197 = scalar_select %p196, %s195, 31
      %s198 = smul.addr %s197, 8
      %s199 = scalar_lea.vmem %s4, %s198
      %s200 = smul.u32 16, %s15
      %v202 = vld [vmem:[%s193] sm:$0xf]
      %v203 = vld [vmem:[%s193 + $0x4] sm:$0xf]
      %v204 = vld [vmem:[%s193 + $0x8] sm:$0xf]
      %v205 = vld [vmem:[%s193 + $0xc] sm:$0xf]
      %v206 = vld [vmem:[%s193 + $0x10] sm:$0xf]
      %v207 = vld [vmem:[%s193 + $0x14] sm:$0xf]
      %v208 = vld [vmem:[%s193 + $0x18] sm:$0xf]
      %v209 = vld [vmem:[%s193 + $0x1c] sm:$0xf]
      %v210 = vld [vmem:[%s193 + $0x20] sm:$0xf]
      %v211 = vld [vmem:[%s193 + $0x24] sm:$0xf]
      %v212 = vld [vmem:[%s193 + $0x28] sm:$0xf]
      %v213 = vld [vmem:[%s193 + $0x2c] sm:$0xf]
      %v214 = vld [vmem:[%s193 + $0x30] sm:$0xf]
      %v215 = vld [vmem:[%s193 + $0x34] sm:$0xf]
      %v216 = vld [vmem:[%s193 + $0x38] sm:$0xf]
      %v217 = vld [vmem:[%s193 + $0x3c] sm:$0xf]
      %v218 = vld [vmem:[%s1] sm:$0xff]
      %v219 = vld [vmem:[%s1 + $0x8] sm:$0xff]
      %v220 = vld [vmem:[%s1 + $0x10] sm:$0xff]
      %v221 = vld [vmem:[%s1 + $0x18] sm:$0xff]
      %v222 = vld [vmem:[%s1 + $0x20] sm:$0xff]
      %v223 = vld [vmem:[%s1 + $0x28] sm:$0xff]
      %v224 = vld [vmem:[%s1 + $0x30] sm:$0xff]
      %v225 = vld [vmem:[%s1 + $0x38] sm:$0xff]
      %v226 = vld [vmem:[%s1 + $0x40] sm:$0xff]
      %v227 = vld [vmem:[%s1 + $0x48] sm:$0xff]
      %v228 = vld [vmem:[%s1 + $0x50] sm:$0xff]
      %v229 = vld [vmem:[%s1 + $0x58] sm:$0xff]
      %v230 = vld [vmem:[%s1 + $0x60] sm:$0xff]
      %v231 = vld [vmem:[%s1 + $0x68] sm:$0xff]
      %v232 = vld [vmem:[%s1 + $0x70] sm:$0xff]
      %v233 = vld [vmem:[%s1 + $0x78] sm:$0xff]
      %v234 = vld [vmem:[%s3] sm:$0x3]
      %v236 = vlaneseq
      %v237 = vshrl.u32 %v236, 7
      %v238 = vsub.s32 0, %v237
      %v239 = vrot.slane %v234, %v238
      %v240 = vlaneseq
      %v241 = vshrl.u32 %v240, 7
      %v242 = vsub.s32 1, %v241
      %v243 = vrot.slane %v234, %v242
      %v262 = vunpack.c.l.b16 %v202
      %v263 = vunpack.c.l.b16 %v203
      %v264 = vunpack.c.l.b16 %v204
      %v265 = vunpack.c.l.b16 %v205
      %v266 = vunpack.c.l.b16 %v206
      %v267 = vunpack.c.l.b16 %v207
      %v268 = vunpack.c.l.b16 %v208
      %v269 = vunpack.c.l.b16 %v209
      %v270 = vunpack.c.l.b16 %v210
      %v271 = vunpack.c.l.b16 %v211
      %v272 = vunpack.c.l.b16 %v212
      %v273 = vunpack.c.l.b16 %v213
      %v274 = vunpack.c.l.b16 %v214
      %v275 = vunpack.c.l.b16 %v215
      %v276 = vunpack.c.l.b16 %v216
      %v277 = vunpack.c.l.b16 %v217
      %v278 = vpack.c.b16 %v263, %v262
      %v279 = vpack.c.b16 %v265, %v264
      %v280 = vpack.c.b16 %v267, %v266
      %v281 = vpack.c.b16 %v269, %v268
      %v282 = vpack.c.b16 %v271, %v270
      %v283 = vpack.c.b16 %v273, %v272
      %v284 = vpack.c.b16 %v275, %v274
      %v285 = vpack.c.b16 %v277, %v276
      %v310 = vunpack.c.l.b16 %v218
      %v311 = vunpack.c.h.b16 %v218
      %v312 = vunpack.c.l.b16 %v219
      %v313 = vunpack.c.h.b16 %v219
      %v314 = vunpack.c.l.b16 %v220
      %v315 = vunpack.c.h.b16 %v220
      %v316 = vunpack.c.l.b16 %v221
      %v317 = vunpack.c.h.b16 %v221
      %v318 = vunpack.c.l.b16 %v222
      %v319 = vunpack.c.h.b16 %v222
      %v320 = vunpack.c.l.b16 %v223
      %v321 = vunpack.c.h.b16 %v223
      %v322 = vunpack.c.l.b16 %v224
      %v323 = vunpack.c.h.b16 %v224
      %v324 = vunpack.c.l.b16 %v225
      %v325 = vunpack.c.h.b16 %v225
      %v326 = vunpack.c.l.b16 %v226
      %v327 = vunpack.c.h.b16 %v226
      %v328 = vunpack.c.l.b16 %v227
      %v329 = vunpack.c.h.b16 %v227
      %v330 = vunpack.c.l.b16 %v228
      %v331 = vunpack.c.h.b16 %v228
      %v332 = vunpack.c.l.b16 %v229
      %v333 = vunpack.c.h.b16 %v229
      %v334 = vunpack.c.l.b16 %v230
      %v335 = vunpack.c.h.b16 %v230
      %v336 = vunpack.c.l.b16 %v231
      %v337 = vunpack.c.h.b16 %v231
      %v338 = vunpack.c.l.b16 %v232
      %v339 = vunpack.c.h.b16 %v232
      %v340 = vunpack.c.l.b16 %v233
      %v341 = vunpack.c.h.b16 %v233
      %v342 = vpack.c.b16 %v312, %v310
      %v343 = vpack.c.b16 %v313, %v311
      %v344 = vpack.c.b16 %v316, %v314
      %v345 = vpack.c.b16 %v317, %v315
      %v346 = vpack.c.b16 %v320, %v318
      %v347 = vpack.c.b16 %v321, %v319
      %v348 = vpack.c.b16 %v324, %v322
      %v349 = vpack.c.b16 %v325, %v323
      %v350 = vpack.c.b16 %v328, %v326
      %v351 = vpack.c.b16 %v329, %v327
      %v352 = vpack.c.b16 %v332, %v330
      %v353 = vpack.c.b16 %v333, %v331
      %v354 = vpack.c.b16 %v336, %v334
      %v355 = vpack.c.b16 %v337, %v335
      %v356 = vpack.c.b16 %v340, %v338
      %v357 = vpack.c.b16 %v341, %v339
      %374 = vmatprep.subr.bf16.mxu0 %v357
      %375 = vmatpush1.bf16.msra.mxu0 %v356
      %376 = vmatprep.subr.bf16.mxu0 %v355
      %377 = vmatpush1.bf16.msra.mxu0 %v354
      %378 = vmatprep.subr.bf16.mxu0 %v353
      %379 = vmatpush1.bf16.msra.mxu0 %v352
      %380 = vmatprep.subr.bf16.mxu0 %v351
      %381 = vmatpush1.bf16.msra.mxu0 %v350
      %382 = vmatprep.subr.bf16.mxu0 %v349
      %383 = vmatpush1.bf16.msra.mxu0 %v348
      %384 = vmatprep.subr.bf16.mxu0 %v347
      %385 = vmatpush1.bf16.msra.mxu0 %v346
      %386 = vmatprep.subr.bf16.mxu0 %v345
      %387 = vmatpush1.bf16.msra.mxu0 %v344
      %388 = vmatprep.subr.bf16.mxu0 %v343
      %389 = vmatpush1.bf16.msra.mxu0 %v342
      %390 = vmatprep.subr.bf16.mxu0 0
      %391 = vmatpush2.bf16.msra.mxu0 0
      %392 = vmatprep.subr.bf16.mxu0 0
      %393 = vmatpush2.bf16.msra.mxu0 0
      %394 = vmatprep.subr.bf16.mxu0 0
      %395 = vmatpush2.bf16.msra.mxu0 0
      %396 = vmatprep.subr.bf16.mxu0 0
      %397 = vmatpush2.bf16.msra.mxu0 0
      %398 = vmatprep.subr.bf16.mxu0 0
      %399 = vmatpush2.bf16.msra.mxu0 0
      %400 = vmatprep.subr.bf16.mxu0 0
      %401 = vmatpush2.bf16.msra.mxu0 0
      %402 = vmatprep.subr.bf16.mxu0 0
      %403 = vmatpush2.bf16.msra.mxu0 0
      %404 = vmatprep.subr.bf16.mxu0 0
      %405 = vmatpush2.bf16.msra.mxu0 0
      %406 = vmatprep.mubr.bf16.mxu0 0
      %407 = vmatmul.mubr.bf16.gmra.mxu0 %v278
      %v408 = vpop.f32.mrf.mxu0
      %v409 = vadd.f32 %v239, %v408
      %v410 = vpop.f32.mrf.mxu0
      %v411 = vadd.f32 %v243, %v410
      %v412 = vpop.f32.mrf.mxu0
      %v413 = vadd.f32 %v239, %v412
      %v414 = vpop.f32.mrf.mxu0
      %v415 = vadd.f32 %v243, %v414
      %416 = vmatprep.mubr.bf16.mxu0 0
      %417 = vmatmul.mubr.bf16.gmra.mxu0 %v279
      %v418 = vpop.f32.mrf.mxu0
      %v419 = vadd.f32 %v239, %v418
      %v420 = vpop.f32.mrf.mxu0
      %v421 = vadd.f32 %v243, %v420
      %v422 = vpop.f32.mrf.mxu0
      %v423 = vadd.f32 %v239, %v422
      %v424 = vpop.f32.mrf.mxu0
      %v425 = vadd.f32 %v243, %v424
      %426 = vmatprep.mubr.bf16.mxu0 0
      %427 = vmatmul.mubr.bf16.gmra.mxu0 %v280
      %v428 = vpop.f32.mrf.mxu0
      %v429 = vadd.f32 %v239, %v428
      %v430 = vpop.f32.mrf.mxu0
      %v431 = vadd.f32 %v243, %v430
      %v432 = vpop.f32.mrf.mxu0
      %v433 = vadd.f32 %v239, %v432
      %v434 = vpop.f32.mrf.mxu0
      %v435 = vadd.f32 %v243, %v434
      %436 = vmatprep.mubr.bf16.mxu0 0
      %437 = vmatmul.mubr.bf16.gmra.mxu0 %v281
      %v438 = vpop.f32.mrf.mxu0
      %v439 = vadd.f32 %v239, %v438
      %v440 = vpop.f32.mrf.mxu0
      %v441 = vadd.f32 %v243, %v440
      %v442 = vpop.f32.mrf.mxu0
      %v443 = vadd.f32 %v239, %v442
      %v444 = vpop.f32.mrf.mxu0
      %v445 = vadd.f32 %v243, %v444
      %446 = vmatprep.mubr.bf16.mxu0 0
      %447 = vmatmul.mubr.bf16.gmra.mxu0 %v282
      %v448 = vpop.f32.mrf.mxu0
      %v449 = vadd.f32 %v239, %v448
      %v450 = vpop.f32.mrf.mxu0
      %v451 = vadd.f32 %v243, %v450
      %v452 = vpop.f32.mrf.mxu0
      %v453 = vadd.f32 %v239, %v452
      %v454 = vpop.f32.mrf.mxu0
      %v455 = vadd.f32 %v243, %v454
      %456 = vmatprep.mubr.bf16.mxu0 0
      %457 = vmatmul.mubr.bf16.gmra.mxu0 %v283
      %v458 = vpop.f32.mrf.mxu0
      %v459 = vadd.f32 %v239, %v458
      %v460 = vpop.f32.mrf.mxu0
      %v461 = vadd.f32 %v243, %v460
      %v462 = vpop.f32.mrf.mxu0
      %v463 = vadd.f32 %v239, %v462
      %v464 = vpop.f32.mrf.mxu0
      %v465 = vadd.f32 %v243, %v464
      %466 = vmatprep.mubr.bf16.mxu0 0
      %467 = vmatmul.mubr.bf16.gmra.mxu0 %v284
      %v468 = vpop.f32.mrf.mxu0
      %v469 = vadd.f32 %v239, %v468
      %v470 = vpop.f32.mrf.mxu0
      %v471 = vadd.f32 %v243, %v470
      %v472 = vpop.f32.mrf.mxu0
      %v473 = vadd.f32 %v239, %v472
      %v474 = vpop.f32.mrf.mxu0
      %v475 = vadd.f32 %v243, %v474
      %476 = vmatprep.mubr.bf16.mxu0 0
      %477 = vmatmul.mubr.bf16.gmra.mxu0 %v285
      %v478 = vpop.f32.mrf.mxu0
      %v479 = vadd.f32 %v239, %v478
      %v480 = vpop.f32.mrf.mxu0
      %v481 = vadd.f32 %v243, %v480
      %v482 = vpop.f32.mrf.mxu0
      %v483 = vadd.f32 %v239, %v482
      %v484 = vpop.f32.mrf.mxu0
      %v485 = vadd.f32 %v243, %v484
      %486 = vdwg.mxu0
      %v487 = vmax.f32 %v409, 0.0
      %v488 = vmax.f32 %v413, 0.0
      %v489 = vmax.f32 %v419, 0.0
      %v490 = vmax.f32 %v423, 0.0
      %v491 = vmax.f32 %v429, 0.0
      %v492 = vmax.f32 %v433, 0.0
      %v493 = vmax.f32 %v439, 0.0
      %v494 = vmax.f32 %v443, 0.0
      %v495 = vmax.f32 %v449, 0.0
      %v496 = vmax.f32 %v453, 0.0
      %v497 = vmax.f32 %v459, 0.0
      %v498 = vmax.f32 %v463, 0.0
      %v499 = vmax.f32 %v469, 0.0
      %v500 = vmax.f32 %v473, 0.0
      %v501 = vmax.f32 %v479, 0.0
      %v502 = vmax.f32 %v483, 0.0
      %v503 = vpack.c.bf16 %v488, %v487
      %v504 = vpack.c.bf16 %v490, %v489
      %v505 = vpack.c.bf16 %v492, %v491
      %v506 = vpack.c.bf16 %v494, %v493
      %v507 = vpack.c.bf16 %v496, %v495
      %v508 = vpack.c.bf16 %v498, %v497
      %v509 = vpack.c.bf16 %v500, %v499
      %v510 = vpack.c.bf16 %v502, %v501
      %v511 = vld [vmem:[%s2] sm:$0xf]
      %v512 = vld [vmem:[%s2 + $0x4] sm:$0xf]
      %v513 = vld [vmem:[%s2 + $0x8] sm:$0xf]
      %v514 = vld [vmem:[%s2 + $0xc] sm:$0xf]
      %v515 = vld [vmem:[%s2 + $0x10] sm:$0xf]
      %v516 = vld [vmem:[%s2 + $0x14] sm:$0xf]
      %v517 = vld [vmem:[%s2 + $0x18] sm:$0xf]
      %v518 = vld [vmem:[%s2 + $0x1c] sm:$0xf]
      %v519 = vld [vmem:[%s2 + $0x20] sm:$0xf]
      %v520 = vld [vmem:[%s2 + $0x24] sm:$0xf]
      %v521 = vld [vmem:[%s2 + $0x28] sm:$0xf]
      %v522 = vld [vmem:[%s2 + $0x2c] sm:$0xf]
      %v523 = vld [vmem:[%s2 + $0x30] sm:$0xf]
      %v524 = vld [vmem:[%s2 + $0x34] sm:$0xf]
      %v525 = vld [vmem:[%s2 + $0x38] sm:$0xf]
      %v526 = vld [vmem:[%s2 + $0x3c] sm:$0xf]
      %v543 = vunpack.c.l.b16 %v511
      %v544 = vunpack.c.l.b16 %v512
      %v545 = vunpack.c.l.b16 %v513
      %v546 = vunpack.c.l.b16 %v514
      %v547 = vunpack.c.l.b16 %v515
      %v548 = vunpack.c.l.b16 %v516
      %v549 = vunpack.c.l.b16 %v517
      %v550 = vunpack.c.l.b16 %v518
      %v551 = vunpack.c.l.b16 %v519
      %v552 = vunpack.c.l.b16 %v520
      %v553 = vunpack.c.l.b16 %v521
      %v554 = vunpack.c.l.b16 %v522
      %v555 = vunpack.c.l.b16 %v523
      %v556 = vunpack.c.l.b16 %v524
      %v557 = vunpack.c.l.b16 %v525
      %v558 = vunpack.c.l.b16 %v526
      %v559 = vpack.c.b16 %v544, %v543
      %v560 = vpack.c.b16 %v546, %v545
      %v561 = vpack.c.b16 %v548, %v547
      %v562 = vpack.c.b16 %v550, %v549
      %v563 = vpack.c.b16 %v552, %v551
      %v564 = vpack.c.b16 %v554, %v553
      %v565 = vpack.c.b16 %v556, %v555
      %v566 = vpack.c.b16 %v558, %v557
      %575 = vmatprep.subr.bf16.mxu0 0
      %576 = vmatpush1.bf16.msra.mxu0 %v566
      %577 = vmatprep.subr.bf16.mxu0 0
      %578 = vmatpush1.bf16.msra.mxu0 %v565
      %579 = vmatprep.subr.bf16.mxu0 0
      %580 = vmatpush1.bf16.msra.mxu0 %v564
      %581 = vmatprep.subr.bf16.mxu0 0
      %582 = vmatpush1.bf16.msra.mxu0 %v563
      %583 = vmatprep.subr.bf16.mxu0 0
      %584 = vmatpush1.bf16.msra.mxu0 %v562
      %585 = vmatprep.subr.bf16.mxu0 0
      %586 = vmatpush1.bf16.msra.mxu0 %v561
      %587 = vmatprep.subr.bf16.mxu0 0
      %588 = vmatpush1.bf16.msra.mxu0 %v560
      %589 = vmatprep.subr.bf16.mxu0 0
      %590 = vmatpush1.bf16.msra.mxu0 %v559
      %591 = vmatprep.subr.bf16.mxu0 0
      %592 = vmatpush2.bf16.msra.mxu0 0
      %593 = vmatprep.subr.bf16.mxu0 0
      %594 = vmatpush2.bf16.msra.mxu0 0
      %595 = vmatprep.subr.bf16.mxu0 0
      %596 = vmatpush2.bf16.msra.mxu0 0
      %597 = vmatprep.subr.bf16.mxu0 0
      %598 = vmatpush2.bf16.msra.mxu0 0
      %599 = vmatprep.subr.bf16.mxu0 0
      %600 = vmatpush2.bf16.msra.mxu0 0
      %601 = vmatprep.subr.bf16.mxu0 0
      %602 = vmatpush2.bf16.msra.mxu0 0
      %603 = vmatprep.subr.bf16.mxu0 0
      %604 = vmatpush2.bf16.msra.mxu0 0
      %605 = vmatprep.subr.bf16.mxu0 0
      %606 = vmatpush2.bf16.msra.mxu0 0
      %607 = vmatprep.mubr.bf16.mxu0 0
      %608 = vmatmul.mubr.bf16.gmra.mxu0 %v503
      %v609 = vpop.f32.mrf.mxu0
      %v610 = vadd.f32 %v411, %v609
      %v611 = vpop.f32.mrf.mxu0
      %v612 = vpop.f32.mrf.mxu0
      %v613 = vadd.f32 %v415, %v612
      %v614 = vpop.f32.mrf.mxu0
      %615 = vmatprep.mubr.bf16.mxu0 0
      %616 = vmatmul.mubr.bf16.gmra.mxu0 %v504
      %v617 = vpop.f32.mrf.mxu0
      %v618 = vadd.f32 %v421, %v617
      %v619 = vpop.f32.mrf.mxu0
      %v620 = vpop.f32.mrf.mxu0
      %v621 = vadd.f32 %v425, %v620
      %v622 = vpop.f32.mrf.mxu0
      %623 = vmatprep.mubr.bf16.mxu0 0
      %624 = vmatmul.mubr.bf16.gmra.mxu0 %v505
      %v625 = vpop.f32.mrf.mxu0
      %v626 = vadd.f32 %v431, %v625
      %v627 = vpop.f32.mrf.mxu0
      %v628 = vpop.f32.mrf.mxu0
      %v629 = vadd.f32 %v435, %v628
      %v630 = vpop.f32.mrf.mxu0
      %631 = vmatprep.mubr.bf16.mxu0 0
      %632 = vmatmul.mubr.bf16.gmra.mxu0 %v506
      %v633 = vpop.f32.mrf.mxu0
      %v634 = vadd.f32 %v441, %v633
      %v635 = vpop.f32.mrf.mxu0
      %v636 = vpop.f32.mrf.mxu0
      %v637 = vadd.f32 %v445, %v636
      %v638 = vpop.f32.mrf.mxu0
      %639 = vmatprep.mubr.bf16.mxu0 0
      %640 = vmatmul.mubr.bf16.gmra.mxu0 %v507
      %v641 = vpop.f32.mrf.mxu0
      %v642 = vadd.f32 %v451, %v641
      %v643 = vpop.f32.mrf.mxu0
      %v644 = vpop.f32.mrf.mxu0
      %v645 = vadd.f32 %v455, %v644
      %v646 = vpop.f32.mrf.mxu0
      %647 = vmatprep.mubr.bf16.mxu0 0
      %648 = vmatmul.mubr.bf16.gmra.mxu0 %v508
      %v649 = vpop.f32.mrf.mxu0
      %v650 = vadd.f32 %v461, %v649
      %v651 = vpop.f32.mrf.mxu0
      %v652 = vpop.f32.mrf.mxu0
      %v653 = vadd.f32 %v465, %v652
      %v654 = vpop.f32.mrf.mxu0
      %655 = vmatprep.mubr.bf16.mxu0 0
      %656 = vmatmul.mubr.bf16.gmra.mxu0 %v509
      %v657 = vpop.f32.mrf.mxu0
      %v658 = vadd.f32 %v471, %v657
      %v659 = vpop.f32.mrf.mxu0
      %v660 = vpop.f32.mrf.mxu0
      %v661 = vadd.f32 %v475, %v660
      %v662 = vpop.f32.mrf.mxu0
      %663 = vmatprep.mubr.bf16.mxu0 0
      %664 = vmatmul.mubr.bf16.gmra.mxu0 %v510
      %v665 = vpop.f32.mrf.mxu0
      %v666 = vadd.f32 %v481, %v665
      %v667 = vpop.f32.mrf.mxu0
      %v668 = vpop.f32.mrf.mxu0
      %v669 = vadd.f32 %v485, %v668
      %v670 = vpop.f32.mrf.mxu0
      %671 = vdwg.mxu0
      %v672 = vmax.f32 %v610, 0.0
      %v673 = vmax.f32 %v613, 0.0
      %v674 = vmax.f32 %v618, 0.0
      %v675 = vmax.f32 %v621, 0.0
      %v676 = vmax.f32 %v626, 0.0
      %v677 = vmax.f32 %v629, 0.0
      %v678 = vmax.f32 %v634, 0.0
      %v679 = vmax.f32 %v637, 0.0
      %v680 = vmax.f32 %v642, 0.0
      %v681 = vmax.f32 %v645, 0.0
      %v682 = vmax.f32 %v650, 0.0
      %v683 = vmax.f32 %v653, 0.0
      %v684 = vmax.f32 %v658, 0.0
      %v685 = vmax.f32 %v661, 0.0
      %v686 = vmax.f32 %v666, 0.0
      %v687 = vmax.f32 %v669, 0.0
      %688 = vst [vmem:[%s199] sm:$0xff] %v672
      %689 = vst [vmem:[%s199 + $0x8] sm:$0xff] %v673
      %690 = vst [vmem:[%s199 + $0x10] sm:$0xff] %v674
      %691 = vst [vmem:[%s199 + $0x18] sm:$0xff] %v675
      %692 = vst [vmem:[%s199 + $0x20] sm:$0xff] %v676
      %693 = vst [vmem:[%s199 + $0x28] sm:$0xff] %v677
      %694 = vst [vmem:[%s199 + $0x30] sm:$0xff] %v678
      %695 = vst [vmem:[%s199 + $0x38] sm:$0xff] %v679
      %696 = vst [vmem:[%s199 + $0x40] sm:$0xff] %v680
      %697 = vst [vmem:[%s199 + $0x48] sm:$0xff] %v681
      %698 = vst [vmem:[%s199 + $0x50] sm:$0xff] %v682
      %699 = vst [vmem:[%s199 + $0x58] sm:$0xff] %v683
      %700 = vst [vmem:[%s199 + $0x60] sm:$0xff] %v684
      %701 = vst [vmem:[%s199 + $0x68] sm:$0xff] %v685
      %702 = vst [vmem:[%s199 + $0x70] sm:$0xff] %v686
      %703 = vst [vmem:[%s199 + $0x78] sm:$0xff] %v687
      %s704 = smul.u32 16, %s15
      %p705 = scmp.lt.s32.totalorder %s704, 31
      %s706 = scalar_select %p705, %s704, 31
      %s707 = smul.addr %s706, 8
      %s708 = scalar_lea.vmem %s4, %s707
      // Predicated region
      $region37: #{sparse_residual_forward.1} parent=35 // pred_check
        %p709 = pneg %p122
      $region38: #{sparse_residual_forward.1} parent=35 // pred_check_branch
        %711 = sbr.rel (%p709) target = $region40
      $region39: #{sparse_residual_forward.1} parent=35 // pred_region
        %s712 = smul.u32 16, %s15
      $region40: #{sparse_residual_forward.1} parent=35 // pred_fallthru
        _
    $region36: #{sparse_residual_forward.1} parent=5 // pred_fallthru
      _
    %p713 = scmp.le.s32.totalorder 2, %s10
    // Predicated region
    $region41: #{sparse_residual_forward.1} parent=5 // pred_check
      %p714 = pneg %p713
    $region42: #{sparse_residual_forward.1} parent=5 // pred_check_branch
      %716 = sbr.rel (%p714) target = $region44
    $region43: #{sparse_residual_forward.1} parent=5 // pred_region
      %s717 = ssub.s32 %s10, 2
      // Predicated region
      $region45: #{sparse_residual_forward.1} parent=43 // pred_check
        %p718 = pneg %p128
      $region46: #{sparse_residual_forward.1} parent=43 // pred_check_branch
        %720 = sbr.rel (%p718) target = $region48
      $region47: #{sparse_residual_forward.1} parent=43 // pred_region
        %s721 = smul.u32 16, %s16
        %p722 = scmp.lt.s32.totalorder %s721, 31
        %s723 = scalar_select %p722, %s721, 31
        %s724 = smul.addr %s723, 8
        %s725 = scalar_lea.vmem %s4, %s724
      $region48: #{sparse_residual_forward.1} parent=43 // pred_fallthru
        _
    $region44: #{sparse_residual_forward.1} parent=5 // pred_fallthru
      _
  $region6: #{sparse_residual_forward.1} parent=0 // loop_footer
    %s14 = sadd.s32 1, %s10
  $region7: #{sparse_residual_forward.1} parent=0 // loop_footer_branch
    %9 = sbr.rel target = $region3
  $region8: #{sparse_residual_forward.1} parent=0 // loop_exit
    _

</llo_original>
